<compile_context>
chip_gen: v6e
topology: v6e:2x2x1
jax: 0.10.0
libtpu: 0.0.40
codegen_flags: <defaults>
</compile_context>

<pallas_src>
import jax
import jax.numpy as jnp
from jax.experimental import pallas as pl

# ---- model dimensions (small, consistent with the forward's tensor flow) ----
B = 2      # batch
S = 8      # sequence length
H = 32     # hidden size
F = 64     # FFN inner size
V = 128    # vocab size (MLM logits)
P = 4      # soft-prompt positions per template

BS = B * S                 # rows per stream
N_ROWS = 2 * BS            # issue + share activations stacked along rows
F_PAD = 128                # FFN inner padded to a full lane tile (zero pad, exact)
LANES = 128
ATTN_SCALE = 1.0 / (H ** 0.5)
LN_EPS = 1e-5

# bf16 weight-slab row offsets (one (W_ROWS, 128) bf16 DMA)
R_WQKV = 0                 # (H, 3H) fused q|k|v, lanes 0:96
R_W1   = 32                # (H, F)  lanes 0:F
R_WLM  = 64                # (H, V)
R_WO   = 96                # (H, H)  lanes 0:H
R_W2   = 128               # (F_PAD, H) lanes 0:H  (rows F..F_PAD are zero)
W_ROWS = R_W2 + F_PAD      # 256

# f32 param-slab row offsets (one (F_ROWS, 128) f32 DMA)
R_WE   = 0                 # word embedding (V, H), lanes 0:H
R_SOFT = R_WE + V          # 128: tiled soft_issue | soft_share | prompt mask
R_VEC  = R_SOFT + BS       # 144: b1, b2, g1, be1, g2, be2, blm
R_BIAS = R_VEC + 8         # 152: block-diagonal attention bias (N_ROWS, N_ROWS)
F_ROWS = R_BIAS + N_ROWS   # 184


# ----------------------------------------------------------------------------
# Single fused kernel: embedding lookup + prompt splice + average + the
# synthetic MLM transformer (single-head attention + FFN + LNs + LM head) on
# BOTH embedding streams at once.
# ----------------------------------------------------------------------------
def fused_plm_kernel(ids_ref, wslab_ref, fslab_ref, logits_ref, outs_ref):
    # ---- unpack the packed f32 slab (one DMA for all small f32 operands) ----
    word_emb   = fslab_ref[R_WE:R_WE + V, 0:H]                   # (V, H)
    soft_issue = fslab_ref[R_SOFT:R_SOFT + BS, 0:H]              # (BS, H), tiled
    soft_share = fslab_ref[R_SOFT:R_SOFT + BS, H:2 * H]          # (BS, H), tiled
    pmask      = fslab_ref[R_SOFT:R_SOFT + BS, 2 * H:3 * H]      # (BS, H), 0/1
    b1  = fslab_ref[R_VEC + 0:R_VEC + 1, :]                      # (1, 128)
    b2  = fslab_ref[R_VEC + 1:R_VEC + 2, 0:H]                    # (1, H)
    g1  = fslab_ref[R_VEC + 2:R_VEC + 3, 0:H]
    be1 = fslab_ref[R_VEC + 3:R_VEC + 4, 0:H]
    g2  = fslab_ref[R_VEC + 4:R_VEC + 5, 0:H]
    be2 = fslab_ref[R_VEC + 5:R_VEC + 6, 0:H]
    blm = fslab_ref[R_VEC + 6:R_VEC + 7, :]                      # (1, 128)
    attn_bias = fslab_ref[R_BIAS:R_BIAS + N_ROWS, 0:N_ROWS]      # (32, 32): 0 / -1e30

    # ---- fused embedding lookup (one-hot @ table on the MXU, no gather) ----
    ids = ids_ref[...]                                           # (BS, 1) int32
    vocab_iota = jax.lax.broadcasted_iota(jnp.int32, (BS, V), 1)
    onehot = (vocab_iota == ids).astype(jnp.float32)             # (BS, V)
    embeds = jnp.dot(onehot, word_emb,
                     preferred_element_type=jnp.float32)         # (BS, H)

    # ---- soft-prompt splice (first P positions per sequence) ----
    out1 = jnp.where(pmask != 0.0, soft_issue, embeds)           # issue template
    out2 = jnp.where(pmask != 0.0, soft_share, embeds)           # share template
    outs_ref[0:BS, :] = out1
    outs_ref[BS:N_ROWS, :] = out2

    # issue stream = (out1+out2)/2 ; share stream = GradReverse(out2) (= out2 fwd)
    x = jnp.concatenate([(out1 + out2) * 0.5, out2], axis=0)     # (N_ROWS, H) f32

    # ---- fused Q|K|V projection: one lane-dense (H,128) matmul ----
    x_bf = x.astype(jnp.bfloat16)
    qkv = jnp.dot(x_bf, wslab_ref[R_WQKV:R_WQKV + H, :],
                  preferred_element_type=jnp.float32)            # (N_ROWS, 128)
    q = qkv[:, 0:H]                                              # 2D column views
    k = qkv[:, H:2 * H]
    v = qkv[:, 2 * H:3 * H]

    # ---- single-head attention as plain 2D matmuls + block-diagonal mask ----
    # TODO(synk): no padding attention_mask is applied; the HF MLM would mask pads.
    scores = jax.lax.dot_general(
        q.astype(jnp.bfloat16), k.astype(jnp.bfloat16),
        dimension_numbers=(((1,), (1,)), ((), ())),
        preferred_element_type=jnp.float32) * ATTN_SCALE + attn_bias
    scores = scores - jnp.max(scores, axis=-1, keepdims=True)
    p = jnp.exp(scores)                                          # masked cols -> 0
    p = p * pl.reciprocal(jnp.sum(p, axis=-1, keepdims=True), approx=True)
    attn = jnp.dot(p.astype(jnp.bfloat16), v.astype(jnp.bfloat16),
                   preferred_element_type=jnp.float32)           # (N_ROWS, H)
    attn = jnp.dot(attn.astype(jnp.bfloat16),
                   wslab_ref[R_WO:R_WO + H, 0:H],
                   preferred_element_type=jnp.float32)           # (N_ROWS, H)

    # ---- residual + layernorm 1 (f32 elementwise) ----
    h = x + attn
    mu = jnp.mean(h, axis=-1, keepdims=True)
    var = jnp.mean((h - mu) ** 2, axis=-1, keepdims=True)
    h = (h - mu) * jax.lax.rsqrt(var + LN_EPS) * g1 + be1

    # ---- FFN (inner dim zero-padded to 128 lanes; mathematically exact) ----
    f = jnp.dot(h.astype(jnp.bfloat16), wslab_ref[R_W1:R_W1 + H, :],
                preferred_element_type=jnp.float32) + b1         # (N_ROWS, 128)
    # TODO(synk): tanh-approx GELU; HF BERT-style MLMs use exact erf GELU.
    f = jax.nn.gelu(f)
    f = jnp.dot(f.astype(jnp.bfloat16),
                wslab_ref[R_W2:R_W2 + F_PAD, 0:H],
                preferred_element_type=jnp.float32) + b2         # (N_ROWS, H)

    # ---- residual + layernorm 2 ----
    h2 = h + f
    mu2 = jnp.mean(h2, axis=-1, keepdims=True)
    var2 = jnp.mean((h2 - mu2) ** 2, axis=-1, keepdims=True)
    h2 = (h2 - mu2) * jax.lax.rsqrt(var2 + LN_EPS) * g2 + be2

    # ---- LM head -> vocab logits (V=128 lanes, lane-dense unmasked store) ----
    logits = jnp.dot(h2.astype(jnp.bfloat16),
                     wslab_ref[R_WLM:R_WLM + H, :],
                     preferred_element_type=jnp.float32) + blm   # (N_ROWS, V)
    logits_ref[...] = logits.astype(logits_ref.dtype)


def _full_spec(shape):
    # whole-array block, single grid point (no grid -> index_map takes no args)
    return pl.BlockSpec(shape, lambda: (0,) * len(shape))


# ----------------------------------------------------------------------------
# Full PromptSharedMLMModel.forward in ONE pallas_call
# ----------------------------------------------------------------------------
def prompt_shared_mlm_forward(input_ids, packed, alpha):
    # ReverseLayerF.apply (grad reverse) is identity in forward; alpha scales grads only.
    # TODO(synk): gradient reversal only affects backward; forward is identity.
    del alpha
    ids2d = input_ids.reshape(BS, 1).astype(jnp.int32)
    logits, outs = pl.pallas_call(
        fused_plm_kernel,
        out_shape=(
            jax.ShapeDtypeStruct((N_ROWS, V), jnp.float32),   # [issue|share] logits
            jax.ShapeDtypeStruct((N_ROWS, H), jnp.float32),   # [out1|out2]
        ),
        in_specs=[
            _full_spec((BS, 1)),          # input_ids (int32)
            _full_spec((W_ROWS, LANES)),  # packed bf16 weight slab (1 DMA)
            _full_spec((F_ROWS, LANES)),  # packed f32 params/mask slab (1 DMA)
        ],
        out_specs=(
            _full_spec((N_ROWS, V)),
            _full_spec((N_ROWS, H)),
        ),
        cost_estimate=pl.CostEstimate(
            flops=1_400_000, transcendentals=6_000, bytes_accessed=200_000),
    )(ids2d, packed["wslab"], packed["fslab"])

    logits = logits.reshape(2, B, S, V)
    outs = outs.reshape(2, B, S, H)
    return logits[0], logits[1], outs[0], outs[1]


# ----------------------------------------------------------------------------
# Deterministic parameter init + one-time packing for the kernel
# ----------------------------------------------------------------------------
def init_params(key):
    ks = jax.random.split(key, 10)
    scale = lambda fan_in: 1.0 / jnp.sqrt(jnp.float32(fan_in))
    return {
        "word_emb":   jax.random.normal(ks[0], (V, H), jnp.float32) * 0.02,
        "soft_issue": jax.random.normal(ks[1], (P, H), jnp.float32) * 0.02,
        "soft_share": jax.random.normal(ks[2], (P, H), jnp.float32) * 0.02,
        "wq":  jax.random.normal(ks[3], (H, H), jnp.float32) * scale(H),
        "wk":  jax.random.normal(ks[4], (H, H), jnp.float32) * scale(H),
        "wv":  jax.random.normal(ks[5], (H, H), jnp.float32) * scale(H),
        "wo":  jax.random.normal(ks[6], (H, H), jnp.float32) * scale(H),
        "w1":  jax.random.normal(ks[7], (H, F), jnp.float32) * scale(H),
        "b1":  jnp.zeros((F,), jnp.float32),
        "w2":  jax.random.normal(ks[8], (F, H), jnp.float32) * scale(F),
        "b2":  jnp.zeros((H,), jnp.float32),
        "g1":  jnp.ones((H,), jnp.float32),
        "be1": jnp.zeros((H,), jnp.float32),
        "g2":  jnp.ones((H,), jnp.float32),
        "be2": jnp.zeros((H,), jnp.float32),
        "wlm": jax.random.normal(ks[9], (H, V), jnp.float32) * scale(H),
        "blm": jnp.zeros((V,), jnp.float32),
    }


def pack_params(p):
    """Fuse / pad / cast everything into two slabs (one bf16, one f32), once."""
    # --- bf16 weight slab ---
    wslab = jnp.zeros((W_ROWS, LANES), jnp.float32)
    wqkv = jnp.concatenate([p["wq"], p["wk"], p["wv"]], axis=1)          # (H, 3H)
    wslab = wslab.at[R_WQKV:R_WQKV + H, 0:3 * H].set(wqkv)
    wslab = wslab.at[R_W1:R_W1 + H, 0:F].set(p["w1"])
    wslab = wslab.at[R_WLM:R_WLM + H, 0:V].set(p["wlm"])
    wslab = wslab.at[R_WO:R_WO + H, 0:H].set(p["wo"])
    wslab = wslab.at[R_W2:R_W2 + F, 0:H].set(p["w2"])                    # rest rows zero
    wslab = wslab.astype(jnp.bfloat16)

    # --- f32 slab: word_emb + tiled soft prompts + prompt mask + biases/LN + attn mask ---
    fslab = jnp.zeros((F_ROWS, LANES), jnp.float32)
    fslab = fslab.at[R_WE:R_WE + V, 0:H].set(p["word_emb"])

    soft_issue_full = jnp.tile(jnp.pad(p["soft_issue"], ((0, S - P), (0, 0))), (B, 1))
    soft_share_full = jnp.tile(jnp.pad(p["soft_share"], ((0, S - P), (0, 0))), (B, 1))
    prompt_mask = jnp.tile((jnp.arange(S) < P).astype(jnp.float32), (B,))[:, None]
    prompt_mask = prompt_mask * jnp.ones((1, H), jnp.float32)            # (BS, H)
    fslab = fslab.at[R_SOFT:R_SOFT + BS, 0:H].set(soft_issue_full)
    fslab = fslab.at[R_SOFT:R_SOFT + BS, H:2 * H].set(soft_share_full)
    fslab = fslab.at[R_SOFT:R_SOFT + BS, 2 * H:3 * H].set(prompt_mask)

    fslab = fslab.at[R_VEC + 0, 0:F].set(p["b1"])
    fslab = fslab.at[R_VEC + 1, 0:H].set(p["b2"])
    fslab = fslab.at[R_VEC + 2, 0:H].set(p["g1"])
    fslab = fslab.at[R_VEC + 3, 0:H].set(p["be1"])
    fslab = fslab.at[R_VEC + 4, 0:H].set(p["g2"])
    fslab = fslab.at[R_VEC + 5, 0:H].set(p["be2"])
    fslab = fslab.at[R_VEC + 6, 0:V].set(p["blm"])

    # block-diagonal additive attention mask over the 2B stacked sequences
    seq_id = jnp.arange(N_ROWS) // S
    bias = jnp.where(seq_id[:, None] == seq_id[None, :], 0.0, -1e30).astype(jnp.float32)
    fslab = fslab.at[R_BIAS:R_BIAS + N_ROWS, 0:N_ROWS].set(bias)

    return {"wslab": wslab, "fslab": fslab}


# ----------------------------------------------------------------------------
# Pure-JAX f32 reference of the same forward (for a tolerance check)
# ----------------------------------------------------------------------------
def reference_forward(input_ids, p, alpha):
    del alpha

    def proc(soft):
        embeds = p["word_emb"][input_ids]                                # (B,S,H)
        soft_full = jnp.pad(soft, ((0, S - P), (0, 0)))[None]            # (1,S,H)
        pos = jnp.arange(S)[None, :, None]
        return jnp.where(pos < P, soft_full, embeds)

    out1 = proc(p["soft_issue"])
    out2 = proc(p["soft_share"])

    def plm(x):                                                          # (B,S,H)
        def block(xb):                                                   # (S,H)
            q, k, v = xb @ p["wq"], xb @ p["wk"], xb @ p["wv"]
            a = jax.nn.softmax((q @ k.T) * ATTN_SCALE, axis=-1)
            h = xb + (a @ v) @ p["wo"]
            mu = h.mean(-1, keepdims=True)
            var = ((h - mu) ** 2).mean(-1, keepdims=True)
            h = (h - mu) * jax.lax.rsqrt(var + LN_EPS) * p["g1"] + p["be1"]
            f = jax.nn.gelu(h @ p["w1"] + p["b1"])
            h2 = h + f @ p["w2"] + p["b2"]
            mu2 = h2.mean(-1, keepdims=True)
            var2 = ((h2 - mu2) ** 2).mean(-1, keepdims=True)
            h2 = (h2 - mu2) * jax.lax.rsqrt(var2 + LN_EPS) * p["g2"] + p["be2"]
            return h2 @ p["wlm"] + p["blm"]
        return jax.vmap(block)(x)

    return plm((out1 + out2) * 0.5), plm(out2), out1, out2


if __name__ == "__main__":
    key = jax.random.PRNGKey(0)
    pkey, dkey = jax.random.split(key)
    params = init_params(pkey)
    packed = pack_params(params)
    input_ids = jax.random.randint(dkey, (B, S), 0, V, dtype=jnp.int32)
    alpha = 0.5

    forward = jax.jit(prompt_shared_mlm_forward)
    outputs, outputs2, out1, out2 = forward(input_ids, packed, alpha)
    jax.block_until_ready((outputs, outputs2, out1, out2))

    assert outputs.shape == (B, S, V) and outputs2.shape == (B, S, V)
    assert out1.shape == (B, S, H) and out2.shape == (B, S, H)
    assert jnp.all(jnp.isfinite(outputs)) and jnp.all(jnp.isfinite(outputs2))

    # correctness vs pure-JAX reference (tolerance covers bf16 MXU + approx reciprocal)
    r_out, r_out2, r_o1, r_o2 = jax.jit(reference_forward)(input_ids, params, alpha)
    assert jnp.allclose(out1, r_o1, atol=1e-3), float(jnp.max(jnp.abs(out1 - r_o1)))
    assert jnp.allclose(out2, r_o2, atol=1e-3), float(jnp.max(jnp.abs(out2 - r_o2)))
    assert jnp.allclose(outputs, r_out, atol=0.15, rtol=0.15), \
        float(jnp.max(jnp.abs(outputs - r_out)))
    assert jnp.allclose(outputs2, r_out2, atol=0.15, rtol=0.15), \
        float(jnp.max(jnp.abs(outputs2 - r_out2)))

    print("KERNEL_OK")
</pallas_src>

<mosaic_0001>
module attributes {stable_mosaic.version = 11 : i64} {
  func.func @fused_plm_kernel(%arg0: memref<16x1xi32, #tpu.memory_space<vmem>>, %arg1: memref<256x128xbf16, #tpu.memory_space<vmem>>, %arg2: memref<184x128xf32, #tpu.memory_space<vmem>>, %arg3: memref<32x128xf32, #tpu.memory_space<vmem>>, %arg4: memref<32x32xf32, #tpu.memory_space<vmem>>) attributes {dimension_semantics = [], scalar_prefetch = 0 : i64, scratch_operands = 0 : i64, tpu.core_type = #tpu.core_type<tc>} {
    %c0 = arith.constant 0 : index
    %c0_0 = arith.constant 0 : index
    %0 = vector.load %arg2[%c0, %c0_0] : memref<184x128xf32, #tpu.memory_space<vmem>>, vector<128x32xf32>
    %c128 = arith.constant 128 : index
    %c0_1 = arith.constant 0 : index
    %1 = vector.load %arg2[%c128, %c0_1] : memref<184x128xf32, #tpu.memory_space<vmem>>, vector<16x32xf32>
    %c128_2 = arith.constant 128 : index
    %c32 = arith.constant 32 : index
    %2 = vector.load %arg2[%c128_2, %c32] : memref<184x128xf32, #tpu.memory_space<vmem>>, vector<16x32xf32>
    %c128_3 = arith.constant 128 : index
    %c64 = arith.constant 64 : index
    %3 = vector.load %arg2[%c128_3, %c64] : memref<184x128xf32, #tpu.memory_space<vmem>>, vector<16x32xf32>
    %c144 = arith.constant 144 : index
    %c0_4 = arith.constant 0 : index
    %4 = vector.load %arg2[%c144, %c0_4] : memref<184x128xf32, #tpu.memory_space<vmem>>, vector<1x128xf32>
    %c145 = arith.constant 145 : index
    %c0_5 = arith.constant 0 : index
    %5 = vector.load %arg2[%c145, %c0_5] : memref<184x128xf32, #tpu.memory_space<vmem>>, vector<1x32xf32>
    %c146 = arith.constant 146 : index
    %c0_6 = arith.constant 0 : index
    %6 = vector.load %arg2[%c146, %c0_6] : memref<184x128xf32, #tpu.memory_space<vmem>>, vector<1x32xf32>
    %c147 = arith.constant 147 : index
    %c0_7 = arith.constant 0 : index
    %7 = vector.load %arg2[%c147, %c0_7] : memref<184x128xf32, #tpu.memory_space<vmem>>, vector<1x32xf32>
    %c148 = arith.constant 148 : index
    %c0_8 = arith.constant 0 : index
    %8 = vector.load %arg2[%c148, %c0_8] : memref<184x128xf32, #tpu.memory_space<vmem>>, vector<1x32xf32>
    %c149 = arith.constant 149 : index
    %c0_9 = arith.constant 0 : index
    %9 = vector.load %arg2[%c149, %c0_9] : memref<184x128xf32, #tpu.memory_space<vmem>>, vector<1x32xf32>
    %c150 = arith.constant 150 : index
    %c0_10 = arith.constant 0 : index
    %10 = vector.load %arg2[%c150, %c0_10] : memref<184x128xf32, #tpu.memory_space<vmem>>, vector<1x128xf32>
    %c152 = arith.constant 152 : index
    %c0_11 = arith.constant 0 : index
    %11 = vector.load %arg2[%c152, %c0_11] : memref<184x128xf32, #tpu.memory_space<vmem>>, vector<32x32xf32>
    %c0_12 = arith.constant 0 : index
    %c0_13 = arith.constant 0 : index
    %12 = vector.load %arg0[%c0_12, %c0_13] : memref<16x1xi32, #tpu.memory_space<vmem>>, vector<16x1xi32>
    %13 = tpu.iota {dimensions = array<i32: 1>} : vector<16x128xi32>
    %14 = vector.broadcast %12 : vector<16x1xi32> to vector<16x128xi32>
    %15 = arith.cmpi eq, %13, %14 : vector<16x128xi32>
    %16 = arith.extui %15 : vector<16x128xi1> to vector<16x128xi32>
    %17 = arith.sitofp %16 : vector<16x128xi32> to vector<16x128xf32>
    %cst = arith.constant dense<0.000000e+00> : vector<16x32xf32>
    %18 = tpu.matmul %17, %0, %cst {dimension_numbers = #tpu.dot_dimension_numbers<[1], [0], [0], [1], [0, 0, 1, 1], [], []>} : vector<16x128xf32>, vector<128x32xf32>, vector<16x32xf32> -> vector<16x32xf32>
    %cst_14 = arith.constant 0.000000e+00 : f32
    %19 = vector.broadcast %cst_14 : f32 to vector<16x32xf32>
    %20 = arith.cmpf one, %3, %19 : vector<16x32xf32>
    %21 = arith.select %20, %1, %18 : vector<16x32xi1>, vector<16x32xf32>
    %cst_15 = arith.constant 0.000000e+00 : f32
    %22 = vector.broadcast %cst_15 : f32 to vector<16x32xf32>
    %23 = arith.cmpf one, %3, %22 : vector<16x32xf32>
    %24 = arith.select %23, %2, %18 : vector<16x32xi1>, vector<16x32xf32>
    %c0_16 = arith.constant 0 : index
    %c0_17 = arith.constant 0 : index
    %25 = vector.load %arg4[%c0_16, %c0_17] : memref<32x32xf32, #tpu.memory_space<vmem>>, vector<16x32xf32>
    tpu.vector_store %arg4[%c0_16, %c0_17], %21 {strides = array<i32>} : memref<32x32xf32, #tpu.memory_space<vmem>>, vector<16x32xf32>,
    %c16 = arith.constant 16 : index
    %c0_18 = arith.constant 0 : index
    %26 = vector.load %arg4[%c16, %c0_18] : memref<32x32xf32, #tpu.memory_space<vmem>>, vector<16x32xf32>
    tpu.vector_store %arg4[%c16, %c0_18], %24 {strides = array<i32>} : memref<32x32xf32, #tpu.memory_space<vmem>>, vector<16x32xf32>,
    %27 = arith.addf %21, %24 : vector<16x32xf32>
    %cst_19 = arith.constant 5.000000e-01 : f32
    %28 = vector.broadcast %cst_19 : f32 to vector<16x32xf32>
    %29 = arith.mulf %27, %28 : vector<16x32xf32>
    %30 = tpu.concatenate %29, %24 in 0 : vector<16x32xf32>, vector<16x32xf32> -> vector<32x32xf32>
    %31 = arith.truncf %30 : vector<32x32xf32> to vector<32x32xbf16>
    %c0_20 = arith.constant 0 : index
    %c0_21 = arith.constant 0 : index
    %32 = vector.load %arg1[%c0_20, %c0_21] : memref<256x128xbf16, #tpu.memory_space<vmem>>, vector<32x128xbf16>
    %cst_22 = arith.constant dense<0.000000e+00> : vector<32x128xf32>
    %33 = tpu.matmul %31, %32, %cst_22 {dimension_numbers = #tpu.dot_dimension_numbers<[1], [0], [0], [1], [0, 0, 1, 1], [], []>} : vector<32x32xbf16>, vector<32x128xbf16>, vector<32x128xf32> -> vector<32x128xf32>
    %34 = vector.extract_strided_slice %33 {offsets = [0, 0], sizes = [32, 32], strides = [1, 1]} : vector<32x128xf32> to vector<32x32xf32>
    %35 = vector.extract_strided_slice %33 {offsets = [0, 32], sizes = [32, 32], strides = [1, 1]} : vector<32x128xf32> to vector<32x32xf32>
    %36 = vector.extract_strided_slice %33 {offsets = [0, 64], sizes = [32, 32], strides = [1, 1]} : vector<32x128xf32> to vector<32x32xf32>
    %37 = arith.truncf %34 : vector<32x32xf32> to vector<32x32xbf16>
    %38 = arith.truncf %35 : vector<32x32xf32> to vector<32x32xbf16>
    %cst_23 = arith.constant dense<0.000000e+00> : vector<32x32xf32>
    %39 = tpu.matmul %37, %38, %cst_23 {dimension_numbers = #tpu.dot_dimension_numbers<[1], [1], [0], [0], [0, 0, 1, 0], [], []>} : vector<32x32xbf16>, vector<32x32xbf16>, vector<32x32xf32> -> vector<32x32xf32>
    %cst_24 = arith.constant 0.176776692 : f32
    %40 = vector.broadcast %cst_24 : f32 to vector<32x32xf32>
    %41 = arith.mulf %39, %40 : vector<32x32xf32>
    %42 = arith.addf %41, %11 : vector<32x32xf32>
    %cst_25 = arith.constant dense<0xFF800000> : vector<32xf32>
    %43 = vector.multi_reduction <maximumf>, %42, %cst_25 [1] : vector<32x32xf32> to vector<32xf32>
    %44 = vector.shape_cast %43 : vector<32xf32> to vector<32x1xf32>
    %45 = vector.broadcast %44 : vector<32x1xf32> to vector<32x32xf32>
    %46 = arith.subf %42, %45 : vector<32x32xf32>
    %47 = math.exp %46 : vector<32x32xf32>
    %cst_26 = arith.constant dense<0.000000e+00> : vector<32xf32>
    %48 = vector.multi_reduction <add>, %47, %cst_26 [1] : vector<32x32xf32> to vector<32xf32>
    %49 = vector.shape_cast %48 : vector<32xf32> to vector<32x1xf32>
    %50 = tpu.reciprocal %49 {approx = true} : vector<32x1xf32> -> vector<32x1xf32>
    %51 = vector.broadcast %50 : vector<32x1xf32> to vector<32x32xf32>
    %52 = arith.mulf %47, %51 : vector<32x32xf32>
    %53 = arith.truncf %52 : vector<32x32xf32> to vector<32x32xbf16>
    %54 = arith.truncf %36 : vector<32x32xf32> to vector<32x32xbf16>
    %cst_27 = arith.constant dense<0.000000e+00> : vector<32x32xf32>
    %55 = tpu.matmul %53, %54, %cst_27 {dimension_numbers = #tpu.dot_dimension_numbers<[1], [0], [0], [1], [0, 0, 1, 1], [], []>} : vector<32x32xbf16>, vector<32x32xbf16>, vector<32x32xf32> -> vector<32x32xf32>
    %56 = arith.truncf %55 : vector<32x32xf32> to vector<32x32xbf16>
    %c96 = arith.constant 96 : index
    %c0_28 = arith.constant 0 : index
    %57 = vector.load %arg1[%c96, %c0_28] : memref<256x128xbf16, #tpu.memory_space<vmem>>, vector<32x32xbf16>
    %cst_29 = arith.constant dense<0.000000e+00> : vector<32x32xf32>
    %58 = tpu.matmul %56, %57, %cst_29 {dimension_numbers = #tpu.dot_dimension_numbers<[1], [0], [0], [1], [0, 0, 1, 1], [], []>} : vector<32x32xbf16>, vector<32x32xbf16>, vector<32x32xf32> -> vector<32x32xf32>
    %59 = arith.addf %30, %58 : vector<32x32xf32>
    %cst_30 = arith.constant dense<0.000000e+00> : vector<32xf32>
    %60 = vector.multi_reduction <add>, %59, %cst_30 [1] : vector<32x32xf32> to vector<32xf32>
    %61 = vector.shape_cast %60 : vector<32xf32> to vector<32x1xf32>
    %cst_31 = arith.constant 3.200000e+01 : f32
    %62 = vector.broadcast %cst_31 : f32 to vector<32x1xf32>
    %63 = arith.divf %61, %62 : vector<32x1xf32>
    %64 = vector.broadcast %63 : vector<32x1xf32> to vector<32x32xf32>
    %65 = arith.subf %59, %64 : vector<32x32xf32>
    %66 = arith.mulf %65, %65 : vector<32x32xf32>
    %cst_32 = arith.constant dense<0.000000e+00> : vector<32xf32>
    %67 = vector.multi_reduction <add>, %66, %cst_32 [1] : vector<32x32xf32> to vector<32xf32>
    %68 = vector.shape_cast %67 : vector<32xf32> to vector<32x1xf32>
    %cst_33 = arith.constant 3.200000e+01 : f32
    %69 = vector.broadcast %cst_33 : f32 to vector<32x1xf32>
    %70 = arith.divf %68, %69 : vector<32x1xf32>
    %71 = vector.broadcast %63 : vector<32x1xf32> to vector<32x32xf32>
    %72 = arith.subf %59, %71 : vector<32x32xf32>
    %cst_34 = arith.constant 9.99999974E-6 : f32
    %73 = vector.broadcast %cst_34 : f32 to vector<32x1xf32>
    %74 = arith.addf %70, %73 : vector<32x1xf32>
    %75 = math.rsqrt %74 : vector<32x1xf32>
    %76 = vector.broadcast %75 : vector<32x1xf32> to vector<32x32xf32>
    %77 = arith.mulf %72, %76 : vector<32x32xf32>
    %78 = vector.broadcast %6 : vector<1x32xf32> to vector<32x32xf32>
    %79 = arith.mulf %77, %78 : vector<32x32xf32>
    %80 = vector.broadcast %7 : vector<1x32xf32> to vector<32x32xf32>
    %81 = arith.addf %79, %80 : vector<32x32xf32>
    %82 = arith.truncf %81 : vector<32x32xf32> to vector<32x32xbf16>
    %c32_35 = arith.constant 32 : index
    %c0_36 = arith.constant 0 : index
    %83 = vector.load %arg1[%c32_35, %c0_36] : memref<256x128xbf16, #tpu.memory_space<vmem>>, vector<32x128xbf16>
    %cst_37 = arith.constant dense<0.000000e+00> : vector<32x128xf32>
    %84 = tpu.matmul %82, %83, %cst_37 {dimension_numbers = #tpu.dot_dimension_numbers<[1], [0], [0], [1], [0, 0, 1, 1], [], []>} : vector<32x32xbf16>, vector<32x128xbf16>, vector<32x128xf32> -> vector<32x128xf32>
    %85 = vector.broadcast %4 : vector<1x128xf32> to vector<32x128xf32>
    %86 = arith.addf %84, %85 : vector<32x128xf32>
    %87 = arith.mulf %86, %86 : vector<32x128xf32>
    %88 = arith.mulf %86, %87 : vector<32x128xf32>
    %cst_38 = arith.constant 4.471500e-02 : f32
    %89 = vector.broadcast %cst_38 : f32 to vector<32x128xf32>
    %90 = arith.mulf %89, %88 : vector<32x128xf32>
    %91 = arith.addf %86, %90 : vector<32x128xf32>
    %cst_39 = arith.constant 0.797884583 : f32
    %92 = vector.broadcast %cst_39 : f32 to vector<32x128xf32>
    %93 = arith.mulf %92, %91 : vector<32x128xf32>
    %94 = math.tanh %93 : vector<32x128xf32>
    %cst_40 = arith.constant 1.000000e+00 : f32
    %95 = vector.broadcast %cst_40 : f32 to vector<32x128xf32>
    %96 = arith.addf %95, %94 : vector<32x128xf32>
    %cst_41 = arith.constant 5.000000e-01 : f32
    %97 = vector.broadcast %cst_41 : f32 to vector<32x128xf32>
    %98 = arith.mulf %97, %96 : vector<32x128xf32>
    %99 = arith.mulf %86, %98 : vector<32x128xf32>
    %100 = arith.truncf %99 : vector<32x128xf32> to vector<32x128xbf16>
    %c128_42 = arith.constant 128 : index
    %c0_43 = arith.constant 0 : index
    %101 = vector.load %arg1[%c128_42, %c0_43] : memref<256x128xbf16, #tpu.memory_space<vmem>>, vector<128x32xbf16>
    %cst_44 = arith.constant dense<0.000000e+00> : vector<32x32xf32>
    %102 = tpu.matmul %100, %101, %cst_44 {dimension_numbers = #tpu.dot_dimension_numbers<[1], [0], [0], [1], [0, 0, 1, 1], [], []>} : vector<32x128xbf16>, vector<128x32xbf16>, vector<32x32xf32> -> vector<32x32xf32>
    %103 = vector.broadcast %5 : vector<1x32xf32> to vector<32x32xf32>
    %104 = arith.addf %102, %103 : vector<32x32xf32>
    %105 = arith.addf %81, %104 : vector<32x32xf32>
    %cst_45 = arith.constant dense<0.000000e+00> : vector<32xf32>
    %106 = vector.multi_reduction <add>, %105, %cst_45 [1] : vector<32x32xf32> to vector<32xf32>
    %107 = vector.shape_cast %106 : vector<32xf32> to vector<32x1xf32>
    %cst_46 = arith.constant 3.200000e+01 : f32
    %108 = vector.broadcast %cst_46 : f32 to vector<32x1xf32>
    %109 = arith.divf %107, %108 : vector<32x1xf32>
    %110 = vector.broadcast %109 : vector<32x1xf32> to vector<32x32xf32>
    %111 = arith.subf %105, %110 : vector<32x32xf32>
    %112 = arith.mulf %111, %111 : vector<32x32xf32>
    %cst_47 = arith.constant dense<0.000000e+00> : vector<32xf32>
    %113 = vector.multi_reduction <add>, %112, %cst_47 [1] : vector<32x32xf32> to vector<32xf32>
    %114 = vector.shape_cast %113 : vector<32xf32> to vector<32x1xf32>
    %cst_48 = arith.constant 3.200000e+01 : f32
    %115 = vector.broadcast %cst_48 : f32 to vector<32x1xf32>
    %116 = arith.divf %114, %115 : vector<32x1xf32>
    %117 = vector.broadcast %109 : vector<32x1xf32> to vector<32x32xf32>
    %118 = arith.subf %105, %117 : vector<32x32xf32>
    %cst_49 = arith.constant 9.99999974E-6 : f32
    %119 = vector.broadcast %cst_49 : f32 to vector<32x1xf32>
    %120 = arith.addf %116, %119 : vector<32x1xf32>
    %121 = math.rsqrt %120 : vector<32x1xf32>
    %122 = vector.broadcast %121 : vector<32x1xf32> to vector<32x32xf32>
    %123 = arith.mulf %118, %122 : vector<32x32xf32>
    %124 = vector.broadcast %8 : vector<1x32xf32> to vector<32x32xf32>
    %125 = arith.mulf %123, %124 : vector<32x32xf32>
    %126 = vector.broadcast %9 : vector<1x32xf32> to vector<32x32xf32>
    %127 = arith.addf %125, %126 : vector<32x32xf32>
    %128 = arith.truncf %127 : vector<32x32xf32> to vector<32x32xbf16>
    %c64_50 = arith.constant 64 : index
    %c0_51 = arith.constant 0 : index
    %129 = vector.load %arg1[%c64_50, %c0_51] : memref<256x128xbf16, #tpu.memory_space<vmem>>, vector<32x128xbf16>
    %cst_52 = arith.constant dense<0.000000e+00> : vector<32x128xf32>
    %130 = tpu.matmul %128, %129, %cst_52 {dimension_numbers = #tpu.dot_dimension_numbers<[1], [0], [0], [1], [0, 0, 1, 1], [], []>} : vector<32x32xbf16>, vector<32x128xbf16>, vector<32x128xf32> -> vector<32x128xf32>
    %131 = vector.broadcast %10 : vector<1x128xf32> to vector<32x128xf32>
    %132 = arith.addf %130, %131 : vector<32x128xf32>
    %c0_53 = arith.constant 0 : index
    %c0_54 = arith.constant 0 : index
    %133 = vector.load %arg3[%c0_53, %c0_54] : memref<32x128xf32, #tpu.memory_space<vmem>>, vector<32x128xf32>
    tpu.vector_store %arg3[%c0_53, %c0_54], %132 {strides = array<i32>} : memref<32x128xf32, #tpu.memory_space<vmem>>, vector<32x128xf32>,
    return
  }
}

</mosaic_0001>

<llo_original>
// kernel: prompt_shared_mlm_forward.1
$region0: #{prompt_shared_mlm_forward.1}
  #allocation0 [shape = 'u32[]', space=smem, size = 0x4, offset = 0x4, fixed_abs, tag = 'smem constant byte address 0x4 - core index']
  #allocation1 [shape = 'u32[144,128]{1,0:T(1,128)}', space=vmem, size = 0x12000, scoped, tag = 'internal scratch']
  %s0 = inlined_call_operand.vmem [shape: s32[16,1], index: 0, kind: input, shape index: {}]
  %s1 = inlined_call_operand.hbm [shape: bf16[256,128], index: 1, kind: input, shape index: {}]
  %s2 = inlined_call_operand.hbm [shape: f32[184,128], index: 2, kind: input, shape index: {}]
  %s3 = inlined_call_operand.vmem [shape: f32[32,128], index: 3, kind: output, shape index: {0}]
  %s4 = inlined_call_operand.vmem [shape: f32[32,32], index: 4, kind: output, shape index: {1}]
  %5 = xla_tuple %s3, %s4
  %s6 = sld [smem:[#allocation0]]
  $region38: #{prompt_shared_mlm_forward.1} parent=0
    _
  %s8 = ssub.s32 1, %s6
  %s9 = scalar_select 0, %s8, %s6
  $region1: #{prompt_shared_mlm_forward.1} parent=0
    #allocation2 [shape = 'u8[65536]{0}', space=vmem, size = 0x10000, scoped, tag = 'input window, operand 1, single buffered']
    #allocation3 [shape = 's32[1]{0}', space=sflag, size = 0x4, scoped, tag = 'scoped memory for prompt_shared_mlm_forward.1']
    #allocation4 [shape = 'u8[94208]{0}', space=vmem, size = 0x17000, scoped, tag = 'input window, operand 2, single buffered']
    #allocation5 [shape = 's32[1]{0}', space=sflag, size = 0x4, scoped, tag = 'scoped memory for prompt_shared_mlm_forward.1']
    %10 = vsyncpa [#allocation3], 0
    %11 = vsyncpa [#allocation5], 0
    // Predicated region
    $region2: #{prompt_shared_mlm_forward.1} parent=1 // pred_check
      _
    $region3: #{prompt_shared_mlm_forward.1} parent=1 // pred_check_branch
      %13 = sbr.rel (0) target = $region5
    $region4: #{prompt_shared_mlm_forward.1} parent=1 // pred_region
      _
    $region5: #{prompt_shared_mlm_forward.1} parent=1 // pred_fallthru
      _
    // Predicated region
    $region6: #{prompt_shared_mlm_forward.1} parent=1 // pred_check
      _
    $region7: #{prompt_shared_mlm_forward.1} parent=1 // pred_check_branch
      %15 = sbr.rel (0) target = $region9
    $region8: #{prompt_shared_mlm_forward.1} parent=1 // pred_region
      %s17 = ssub.s32 2048, 2048
      %18 = vsyncadd [#allocation3], %s17
      %s19 = sshll.u32 [#allocation2], 4
      %s20 = int_to_ptr.vmem [resolvable:$true] %s19
      %25 = dma.hbm_to_vmem [thread:$0]  %s1, 2048, %s20, [#allocation3], 64, 64, 4
    $region9: #{prompt_shared_mlm_forward.1} parent=1 // pred_fallthru
      _
    // Predicated region
    $region10: #{prompt_shared_mlm_forward.1} parent=1 // pred_check
      _
    $region11: #{prompt_shared_mlm_forward.1} parent=1 // pred_check_branch
      %27 = sbr.rel (0) target = $region13
    $region12: #{prompt_shared_mlm_forward.1} parent=1 // pred_region
      %s29 = ssub.s32 2944, 2944
      %30 = vsyncadd [#allocation5], %s29
      %s31 = sshll.u32 [#allocation4], 4
      %s32 = int_to_ptr.vmem [resolvable:$true] %s31
      %37 = dma.hbm_to_vmem [thread:$0]  %s2, 2944, %s32, [#allocation5], 128, 128, 8
    $region13: #{prompt_shared_mlm_forward.1} parent=1 // pred_fallthru
      _
    // Predicated region
    $region14: #{prompt_shared_mlm_forward.1} parent=1 // pred_check
      _
    $region15: #{prompt_shared_mlm_forward.1} parent=1 // pred_check_branch
      %39 = sbr.rel (0) target = $region17
    $region16: #{prompt_shared_mlm_forward.1} parent=1 // pred_region
      %40 = dma.done [#allocation3], 2048
    $region17: #{prompt_shared_mlm_forward.1} parent=1 // pred_fallthru
      _
    // Predicated region
    $region18: #{prompt_shared_mlm_forward.1} parent=1 // pred_check
      _
    $region19: #{prompt_shared_mlm_forward.1} parent=1 // pred_check_branch
      %42 = sbr.rel (0) target = $region21
    $region20: #{prompt_shared_mlm_forward.1} parent=1 // pred_region
      %43 = dma.done [#allocation5], 2944
    $region21: #{prompt_shared_mlm_forward.1} parent=1 // pred_fallthru
      _
    %v45 = vld [vmem:[#allocation4] sm:$0xff]
    %v46 = vld [vmem:[#allocation4 + $0x8] sm:$0xff]
    %v47 = vld [vmem:[#allocation4 + $0x10] sm:$0xff]
    %v48 = vld [vmem:[#allocation4 + $0x18] sm:$0xff]
    %v49 = vld [vmem:[#allocation4 + $0x20] sm:$0xff]
    %v50 = vld [vmem:[#allocation4 + $0x28] sm:$0xff]
    %v51 = vld [vmem:[#allocation4 + $0x30] sm:$0xff]
    %v52 = vld [vmem:[#allocation4 + $0x38] sm:$0xff]
    %v53 = vld [vmem:[#allocation4 + $0x40] sm:$0xff]
    %v54 = vld [vmem:[#allocation4 + $0x48] sm:$0xff]
    %v55 = vld [vmem:[#allocation4 + $0x50] sm:$0xff]
    %v56 = vld [vmem:[#allocation4 + $0x58] sm:$0xff]
    %v57 = vld [vmem:[#allocation4 + $0x60] sm:$0xff]
    %v58 = vld [vmem:[#allocation4 + $0x68] sm:$0xff]
    %v59 = vld [vmem:[#allocation4 + $0x70] sm:$0xff]
    %v60 = vld [vmem:[#allocation4 + $0x78] sm:$0xff]
    %v61 = vld [vmem:[#allocation4 + $0x80] sm:$0xff]
    %v62 = vld [vmem:[#allocation4 + $0x88] sm:$0xff]
    %v63 = vld [vmem:[#allocation4 + $0x90] sm:$0x1]
    %v64 = vld [vmem:[#allocation4 + $0x91] sm:$0x1]
    %v65 = vld [vmem:[#allocation4 + $0x92] sm:$0x1]
    %v66 = vld [vmem:[#allocation4 + $0x93] sm:$0x1]
    %v67 = vld [vmem:[#allocation4 + $0x94] sm:$0x1]
    %v68 = vld [vmem:[#allocation4 + $0x95] sm:$0x1]
    %v69 = vld [vmem:[#allocation4 + $0x96] sm:$0x1]
    %v70 = vld [vmem:[#allocation4 + $0x98] sm:$0xff]
    %v71 = vld [vmem:[#allocation4 + $0xa0] sm:$0xff]
    %v72 = vld [vmem:[#allocation4 + $0xa8] sm:$0xff]
    %v73 = vld [vmem:[#allocation4 + $0xb0] sm:$0xff]
    %v74 = vld [vmem:[%s0] sm:$0xff]
    %v75 = vld [vmem:[%s0 + $0x8] sm:$0xff]
    %v76 = vlaneseq
    %v77 = vand.u32 %v76, 127
    %78 = vset.pattern.permute.xlu0 0
    %79 = vperm.xlu0 %78, %v74
    %v80 = vpop.permute.xlu0 %79
    %81 = vset.pattern.permute.xlu0 0
    %82 = vperm.xlu0 %81, %v75
    %v83 = vpop.permute.xlu0 %82
    %vm84 = vcmp.eq.s32.totalorder %v77, %v80
    %vm85 = vcmp.eq.s32.totalorder %v77, %v83
    %v86 = vsel %vm84, 1, 0
    %v87 = vsel %vm85, 1, 0
    %v88 = vcvt.s32.f32 %v86
    %v89 = vcvt.s32.f32 %v87
    %90 = vmatprep.subr.mxu0 0.0
    %91 = vmatpush1.msra.mxu0 %v60
    %92 = vmatprep.subr.mxu0 0.0
    %93 = vmatpush1.msra.mxu0 %v59
    %94 = vmatprep.subr.mxu0 0.0
    %95 = vmatpush1.msra.mxu0 %v58
    %96 = vmatprep.subr.mxu0 0.0
    %97 = vmatpush1.msra.mxu0 %v57
    %98 = vmatprep.subr.mxu0 0.0
    %99 = vmatpush1.msra.mxu0 %v56
    %100 = vmatprep.subr.mxu0 0.0
    %101 = vmatpush1.msra.mxu0 %v55
    %102 = vmatprep.subr.mxu0 0.0
    %103 = vmatpush1.msra.mxu0 %v54
    %104 = vmatprep.subr.mxu0 0.0
    %105 = vmatpush1.msra.mxu0 %v53
    %106 = vmatprep.subr.mxu0 0.0
    %107 = vmatpush1.msra.mxu0 %v52
    %108 = vmatprep.subr.mxu0 0.0
    %109 = vmatpush1.msra.mxu0 %v51
    %110 = vmatprep.subr.mxu0 0.0
    %111 = vmatpush1.msra.mxu0 %v50
    %112 = vmatprep.subr.mxu0 0.0
    %113 = vmatpush1.msra.mxu0 %v49
    %114 = vmatprep.subr.mxu0 0.0
    %115 = vmatpush1.msra.mxu0 %v48
    %116 = vmatprep.subr.mxu0 0.0
    %117 = vmatpush1.msra.mxu0 %v47
    %118 = vmatprep.subr.mxu0 0.0
    %119 = vmatpush1.msra.mxu0 %v46
    %120 = vmatprep.subr.mxu0 0.0
    %121 = vmatpush1.msra.mxu0 %v45
    %122 = vmatprep.subr.mxu0 0.0
    %123 = vmatpush2.msra.mxu0 0.0
    %124 = vmatprep.subr.mxu0 0.0
    %125 = vmatpush2.msra.mxu0 0.0
    %126 = vmatprep.subr.mxu0 0.0
    %127 = vmatpush2.msra.mxu0 0.0
    %128 = vmatprep.subr.mxu0 0.0
    %129 = vmatpush2.msra.mxu0 0.0
    %130 = vmatprep.subr.mxu0 0.0
    %131 = vmatpush2.msra.mxu0 0.0
    %132 = vmatprep.subr.mxu0 0.0
    %133 = vmatpush2.msra.mxu0 0.0
    %134 = vmatprep.subr.mxu0 0.0
    %135 = vmatpush2.msra.mxu0 0.0
    %136 = vmatprep.subr.mxu0 0.0
    %137 = vmatpush2.msra.mxu0 0.0
    %138 = vmatprep.subr.mxu0 0.0
    %139 = vmatpush2.msra.mxu0 0.0
    %140 = vmatprep.subr.mxu0 0.0
    %141 = vmatpush2.msra.mxu0 0.0
    %142 = vmatprep.subr.mxu0 0.0
    %143 = vmatpush2.msra.mxu0 0.0
    %144 = vmatprep.subr.mxu0 0.0
    %145 = vmatpush2.msra.mxu0 0.0
    %146 = vmatprep.subr.mxu0 0.0
    %147 = vmatpush2.msra.mxu0 0.0
    %148 = vmatprep.subr.mxu0 0.0
    %149 = vmatpush2.msra.mxu0 0.0
    %150 = vmatprep.subr.mxu0 0.0
    %151 = vmatpush2.msra.mxu0 0.0
    %152 = vmatprep.subr.mxu0 0.0
    %153 = vmatpush2.msra.mxu0 0.0
    %154 = vmatprep.mubr.f32.mxu0 0.0
    %155 = vmatmul.mubr.f32.gmra.mxu0 %v88
    %v156 = vpop.f32.mrf.mxu0
    %v157 = vadd.f32 0.0, %v156
    %v158 = vpop.f32.mrf.mxu0
    %159 = vmatprep.mubr.f32.mxu0 0.0
    %160 = vmatmul.mubr.f32.gmra.mxu0 %v89
    %v161 = vpop.f32.mrf.mxu0
    %v162 = vadd.f32 0.0, %v161
    %v163 = vpop.f32.mrf.mxu0
    %164 = vdwg.mxu0
    %vm165 = vcmp.ne.f32.partialorder %v61, 0.0
    %vm166 = vcmp.ne.f32.partialorder %v62, 0.0
    %169 = vrot.lane.b32.xlu0 %v61, 64
    %v170 = vpop.permute.xlu0 %169
    %171 = vrot.lane.b32.xlu0 %v62, 64
    %v172 = vpop.permute.xlu0 %171
    %177 = vrot.lane.b32.xlu0 %v157, 64
    %v178 = vpop.permute.xlu0 %177
    %179 = vrot.lane.b32.xlu0 %v162, 64
    %v180 = vpop.permute.xlu0 %179
    %v183 = vsel %vm165, %v170, %v178
    %v184 = vsel %vm166, %v172, %v180
    %185 = vrot.lane.b32.xlu0 %v61, 32
    %v186 = vpop.permute.xlu0 %185
    %187 = vrot.lane.b32.xlu0 %v62, 32
    %v188 = vpop.permute.xlu0 %187
    %v191 = vsel %vm165, %v186, %v178
    %v192 = vsel %vm166, %v188, %v180
    %195 = vrot.lane.b32.xlu0 %v183, 64
    %v196 = vpop.permute.xlu0 %195
    %197 = vrot.lane.b32.xlu0 %v184, 64
    %v198 = vpop.permute.xlu0 %197
    %vm201 = vcmask 261120
    %202 = vst.msk [vmem:[%s4] sm:$0xff] %vm201, %v196
    %203 = vst.msk [vmem:[%s4 + $0x8] sm:$0xff] %vm201, %v198
    %206 = vrot.lane.b32.xlu0 %v191, 64
    %v207 = vpop.permute.xlu0 %206
    %208 = vrot.lane.b32.xlu0 %v192, 64
    %v209 = vpop.permute.xlu0 %208
    %212 = vst.msk [vmem:[%s4 + $0x10] sm:$0xff] %vm201, %v207
    %213 = vst.msk [vmem:[%s4 + $0x18] sm:$0xff] %vm201, %v209
    %v214 = vadd.f32 %v183, %v191
    %v215 = vadd.f32 %v184, %v192
    %v216 = vmul.f32 %v214, 0.5
    %v217 = vmul.f32 %v215, 0.5
    %v218 = vpack.c.bf16 %v217, %v216
    %v219 = vpack.c.bf16 %v192, %v191
    %v220 = vld [vmem:[#allocation2] sm:$0xf]
    %v221 = vld [vmem:[#allocation2 + $0x4] sm:$0xf]
    %v222 = vld [vmem:[#allocation2 + $0x8] sm:$0xf]
    %v223 = vld [vmem:[#allocation2 + $0xc] sm:$0xf]
    %226 = vrot.lane.b32.xlu0 %v218, 64
    %v227 = vpop.permute.xlu0 %226
    %228 = vrot.lane.b32.xlu0 %v219, 64
    %v229 = vpop.permute.xlu0 %228
    %v234 = vunpack.c.l.b16 %v220
    %v235 = vunpack.c.l.b16 %v221
    %v236 = vunpack.c.l.b16 %v222
    %v237 = vunpack.c.l.b16 %v223
    %v238 = vpack.c.b16 %v235, %v234
    %v239 = vpack.c.b16 %v237, %v236
    %v243 = vsel %vm201, %v227, 0
    %v246 = vsel %vm201, %v229, 0
    %248 = vmatprep.subr.bf16.mxu0 0
    %249 = vmatpush1.bf16.msra.mxu0 0
    %250 = vmatprep.subr.bf16.mxu0 0
    %251 = vmatpush1.bf16.msra.mxu0 0
    %252 = vmatprep.subr.bf16.mxu0 0
    %253 = vmatpush1.bf16.msra.mxu0 0
    %254 = vmatprep.subr.bf16.mxu0 0
    %255 = vmatpush1.bf16.msra.mxu0 0
    %256 = vmatprep.subr.bf16.mxu0 0
    %257 = vmatpush1.bf16.msra.mxu0 0
    %258 = vmatprep.subr.bf16.mxu0 0
    %259 = vmatpush1.bf16.msra.mxu0 0
    %260 = vmatprep.subr.bf16.mxu0 0
    %261 = vmatpush1.bf16.msra.mxu0 %v239
    %262 = vmatprep.subr.bf16.mxu0 0
    %263 = vmatpush1.bf16.msra.mxu0 %v238
    %264 = vmatprep.subr.bf16.mxu0 0
    %265 = vmatpush2.bf16.msra.mxu0 0
    %266 = vmatprep.subr.bf16.mxu0 0
    %267 = vmatpush2.bf16.msra.mxu0 0
    %268 = vmatprep.subr.bf16.mxu0 0
    %269 = vmatpush2.bf16.msra.mxu0 0
    %270 = vmatprep.subr.bf16.mxu0 0
    %271 = vmatpush2.bf16.msra.mxu0 0
    %272 = vmatprep.subr.bf16.mxu0 0
    %273 = vmatpush2.bf16.msra.mxu0 0
    %274 = vmatprep.subr.bf16.mxu0 0
    %275 = vmatpush2.bf16.msra.mxu0 0
    %276 = vmatprep.subr.bf16.mxu0 0
    %277 = vmatpush2.bf16.msra.mxu0 0
    %278 = vmatprep.subr.bf16.mxu0 0
    %279 = vmatpush2.bf16.msra.mxu0 0
    %280 = vmatprep.mubr.bf16.mxu0 0
    %281 = vmatmul.mubr.bf16.gmra.mxu0 %v243
    %v282 = vpop.f32.mrf.mxu0
    %v283 = vadd.f32 0.0, %v282
    %v284 = vpop.f32.mrf.mxu0
    %v285 = vpop.f32.mrf.mxu0
    %v286 = vadd.f32 0.0, %v285
    %v287 = vpop.f32.mrf.mxu0
    %288 = vmatprep.mubr.bf16.mxu0 0
    %289 = vmatmul.mubr.bf16.gmra.mxu0 %v246
    %v290 = vpop.f32.mrf.mxu0
    %v291 = vadd.f32 0.0, %v290
    %v292 = vpop.f32.mrf.mxu0
    %v293 = vpop.f32.mrf.mxu0
    %v294 = vadd.f32 0.0, %v293
    %v295 = vpop.f32.mrf.mxu0
    %296 = vdwg.mxu0
    %v297 = vpack.c.bf16 %v286, %v283
    %v298 = vpack.c.bf16 %v294, %v291
    %301 = vrot.lane.b32.xlu0 %v297, 96
    %v302 = vpop.permute.xlu0 %301
    %303 = vrot.lane.b32.xlu0 %v298, 96
    %v304 = vpop.permute.xlu0 %303
    %v306 = vsel %vm201, %v297, 0
    %v309 = vsel %vm201, %v298, 0
    %v312 = vsel %vm201, %v302, 0
    %v315 = vsel %vm201, %v304, 0
    %317 = vmatprep.subr.bf16.mxu0 0
    %318 = vmatpush1.bf16.xpose.msra.mxu0 0
    %319 = vmatprep.subr.bf16.mxu0 0
    %320 = vmatpush1.bf16.xpose.msra.mxu0 0
    %321 = vmatprep.subr.bf16.mxu0 0
    %322 = vmatpush1.bf16.xpose.msra.mxu0 0
    %323 = vmatprep.subr.bf16.mxu0 0
    %324 = vmatpush1.bf16.xpose.msra.mxu0 0
    %325 = vmatprep.subr.bf16.mxu0 0
    %326 = vmatpush1.bf16.xpose.msra.mxu0 0
    %327 = vmatprep.subr.bf16.mxu0 0
    %328 = vmatpush1.bf16.xpose.msra.mxu0 0
    %329 = vmatprep.subr.bf16.mxu0 0
    %330 = vmatpush1.bf16.xpose.msra.mxu0 %v315
    %331 = vmatprep.subr.bf16.mxu0 0
    %332 = vmatpush1.bf16.xpose.msra.mxu0 %v312
    %333 = vmatprep.subr.bf16.mxu0 0
    %334 = vmatpush2.bf16.xpose.msra.mxu0 0
    %335 = vmatprep.subr.bf16.mxu0 0
    %336 = vmatpush2.bf16.xpose.msra.mxu0 0
    %337 = vmatprep.subr.bf16.mxu0 0
    %338 = vmatpush2.bf16.xpose.msra.mxu0 0
    %339 = vmatprep.subr.bf16.mxu0 0
    %340 = vmatpush2.bf16.xpose.msra.mxu0 0
    %341 = vmatprep.subr.bf16.mxu0 0
    %342 = vmatpush2.bf16.xpose.msra.mxu0 0
    %343 = vmatprep.subr.bf16.mxu0 0
    %344 = vmatpush2.bf16.xpose.msra.mxu0 0
    %345 = vmatprep.subr.bf16.mxu0 0
    %346 = vmatpush2.bf16.xpose.msra.mxu0 0
    %347 = vmatprep.subr.bf16.mxu0 0
    %348 = vmatpush2.bf16.xpose.msra.mxu0 0
    %349 = vmatprep.mubr.bf16.mxu0 0
    %350 = vmatmul.mubr.bf16.gmra.mxu0 %v306
    %v351 = vpop.f32.mrf.mxu0
    %v352 = vadd.f32 0.0, %v351
    %v353 = vpop.f32.mrf.mxu0
    %v354 = vpop.f32.mrf.mxu0
    %v355 = vadd.f32 0.0, %v354
    %v356 = vpop.f32.mrf.mxu0
    %357 = vmatprep.mubr.bf16.mxu0 0
    %358 = vmatmul.mubr.bf16.gmra.mxu0 %v309
    %v359 = vpop.f32.mrf.mxu0
    %v360 = vadd.f32 0.0, %v359
    %v361 = vpop.f32.mrf.mxu0
    %v362 = vpop.f32.mrf.mxu0
    %v363 = vadd.f32 0.0, %v362
    %v364 = vpop.f32.mrf.mxu0
    %365 = vdwg.mxu0
    %v366 = vmul.f32 %v352, 0.17677669
    %v367 = vmul.f32 %v355, 0.17677669
    %v368 = vmul.f32 %v360, 0.17677669
    %v369 = vmul.f32 %v363, 0.17677669
    %v370 = vadd.f32 %v366, %v70
    %v371 = vadd.f32 %v367, %v71
    %v372 = vadd.f32 %v368, %v72
    %v373 = vadd.f32 %v369, %v73
    %v374 = vsel %vm201, %v370, -inf
    %375 = vmax.xlane.f32.xlu0 %v374
    %v376 = vpop.xlane.xlu0 %375
    %v377 = vsel %vm201, %v371, -inf
    %378 = vmax.xlane.f32.xlu0 %v377
    %v379 = vpop.xlane.xlu0 %378
    %v380 = vsel %vm201, %v372, -inf
    %381 = vmax.xlane.f32.xlu0 %v380
    %v382 = vpop.xlane.xlu0 %381
    %v383 = vsel %vm201, %v373, -inf
    %384 = vmax.xlane.f32.xlu0 %v383
    %v385 = vpop.xlane.xlu0 %384
    %v386 = vsub.f32 %v370, %v376
    %v387 = vsub.f32 %v371, %v379
    %v388 = vsub.f32 %v372, %v382
    %v389 = vsub.f32 %v373, %v385
    %v390 = vmul.f32 %v386, 1.442695
    %v391 = vpow.pop %v390
    %v392 = vmul.f32 %v387, 1.442695
    %v393 = vpow.pop %v392
    %v394 = vmul.f32 %v388, 1.442695
    %v395 = vpow.pop %v394
    %v396 = vmul.f32 %v389, 1.442695
    %v397 = vpow.pop %v396
    %v398 = vsel %vm201, %v391, 0.0
    %399 = vadd.xlane.f32.xlu0 %v398
    %v400 = vpop.xlane.xlu0 %399
    %v401 = vsel %vm201, %v393, 0.0
    %402 = vadd.xlane.f32.xlu0 %v401
    %v403 = vpop.xlane.xlu0 %402
    %v404 = vsel %vm201, %v395, 0.0
    %405 = vadd.xlane.f32.xlu0 %v404
    %v406 = vpop.xlane.xlu0 %405
    %v407 = vsel %vm201, %v397, 0.0
    %408 = vadd.xlane.f32.xlu0 %v407
    %v409 = vpop.xlane.xlu0 %408
    %v410 = vrcp.pop %v400
    %v411 = vrcp.pop %v403
    %v412 = vrcp.pop %v406
    %v413 = vrcp.pop %v409
    %v414 = vmul.f32 %v391, %v410
    %v415 = vmul.f32 %v393, %v411
    %v416 = vmul.f32 %v395, %v412
    %v417 = vmul.f32 %v397, %v413
    %v418 = vpack.c.bf16 %v415, %v414
    %v419 = vpack.c.bf16 %v417, %v416
    %420 = vrot.lane.b32.xlu0 %v297, 64
    %v421 = vpop.permute.xlu0 %420
    %422 = vrot.lane.b32.xlu0 %v298, 64
    %v423 = vpop.permute.xlu0 %422
    %v427 = vsel %vm201, %v418, 0
    %v430 = vsel %vm201, %v419, 0
    %432 = vmatprep.subr.bf16.mxu0 0
    %433 = vmatpush1.bf16.msra.mxu0 0
    %434 = vmatprep.subr.bf16.mxu0 0
    %435 = vmatpush1.bf16.msra.mxu0 0
    %436 = vmatprep.subr.bf16.mxu0 0
    %437 = vmatpush1.bf16.msra.mxu0 0
    %438 = vmatprep.subr.bf16.mxu0 0
    %439 = vmatpush1.bf16.msra.mxu0 0
    %440 = vmatprep.subr.bf16.mxu0 0
    %441 = vmatpush1.bf16.msra.mxu0 0
    %442 = vmatprep.subr.bf16.mxu0 0
    %443 = vmatpush1.bf16.msra.mxu0 0
    %444 = vmatprep.subr.bf16.mxu0 0
    %445 = vmatpush1.bf16.msra.mxu0 %v423
    %446 = vmatprep.subr.bf16.mxu0 0
    %447 = vmatpush1.bf16.msra.mxu0 %v421
    %448 = vmatprep.subr.bf16.mxu0 0
    %449 = vmatpush2.bf16.msra.mxu0 0
    %450 = vmatprep.subr.bf16.mxu0 0
    %451 = vmatpush2.bf16.msra.mxu0 0
    %452 = vmatprep.subr.bf16.mxu0 0
    %453 = vmatpush2.bf16.msra.mxu0 0
    %454 = vmatprep.subr.bf16.mxu0 0
    %455 = vmatpush2.bf16.msra.mxu0 0
    %456 = vmatprep.subr.bf16.mxu0 0
    %457 = vmatpush2.bf16.msra.mxu0 0
    %458 = vmatprep.subr.bf16.mxu0 0
    %459 = vmatpush2.bf16.msra.mxu0 0
    %460 = vmatprep.subr.bf16.mxu0 0
    %461 = vmatpush2.bf16.msra.mxu0 0
    %462 = vmatprep.subr.bf16.mxu0 0
    %463 = vmatpush2.bf16.msra.mxu0 0
    %464 = vmatprep.mubr.bf16.mxu0 0
    %465 = vmatmul.mubr.bf16.gmra.mxu0 %v427
    %v466 = vpop.f32.mrf.mxu0
    %v467 = vadd.f32 0.0, %v466
    %v468 = vpop.f32.mrf.mxu0
    %v469 = vpop.f32.mrf.mxu0
    %v470 = vadd.f32 0.0, %v469
    %v471 = vpop.f32.mrf.mxu0
    %472 = vmatprep.mubr.bf16.mxu0 0
    %473 = vmatmul.mubr.bf16.gmra.mxu0 %v430
    %v474 = vpop.f32.mrf.mxu0
    %v475 = vadd.f32 0.0, %v474
    %v476 = vpop.f32.mrf.mxu0
    %v477 = vpop.f32.mrf.mxu0
    %v478 = vadd.f32 0.0, %v477
    %v479 = vpop.f32.mrf.mxu0
    %480 = vdwg.mxu0
    %v481 = vpack.c.bf16 %v470, %v467
    %v482 = vpack.c.bf16 %v478, %v475
    %v483 = vld [vmem:[#allocation2 + $0x30] sm:$0xf]
    %v484 = vld [vmem:[#allocation2 + $0x34] sm:$0xf]
    %v485 = vld [vmem:[#allocation2 + $0x38] sm:$0xf]
    %v486 = vld [vmem:[#allocation2 + $0x3c] sm:$0xf]
    %v491 = vunpack.c.l.b16 %v483
    %v492 = vunpack.c.l.b16 %v484
    %v493 = vunpack.c.l.b16 %v485
    %v494 = vunpack.c.l.b16 %v486
    %v495 = vpack.c.b16 %v492, %v491
    %v496 = vpack.c.b16 %v494, %v493
    %v500 = vsel %vm201, %v481, 0
    %v503 = vsel %vm201, %v482, 0
    %505 = vmatprep.subr.bf16.mxu0 0
    %506 = vmatpush1.bf16.msra.mxu0 0
    %507 = vmatprep.subr.bf16.mxu0 0
    %508 = vmatpush1.bf16.msra.mxu0 0
    %509 = vmatprep.subr.bf16.mxu0 0
    %510 = vmatpush1.bf16.msra.mxu0 0
    %511 = vmatprep.subr.bf16.mxu0 0
    %512 = vmatpush1.bf16.msra.mxu0 0
    %513 = vmatprep.subr.bf16.mxu0 0
    %514 = vmatpush1.bf16.msra.mxu0 0
    %515 = vmatprep.subr.bf16.mxu0 0
    %516 = vmatpush1.bf16.msra.mxu0 0
    %517 = vmatprep.subr.bf16.mxu0 0
    %518 = vmatpush1.bf16.msra.mxu0 %v496
    %519 = vmatprep.subr.bf16.mxu0 0
    %520 = vmatpush1.bf16.msra.mxu0 %v495
    %521 = vmatprep.subr.bf16.mxu0 0
    %522 = vmatpush2.bf16.msra.mxu0 0
    %523 = vmatprep.subr.bf16.mxu0 0
    %524 = vmatpush2.bf16.msra.mxu0 0
    %525 = vmatprep.subr.bf16.mxu0 0
    %526 = vmatpush2.bf16.msra.mxu0 0
    %527 = vmatprep.subr.bf16.mxu0 0
    %528 = vmatpush2.bf16.msra.mxu0 0
    %529 = vmatprep.subr.bf16.mxu0 0
    %530 = vmatpush2.bf16.msra.mxu0 0
    %531 = vmatprep.subr.bf16.mxu0 0
    %532 = vmatpush2.bf16.msra.mxu0 0
    %533 = vmatprep.subr.bf16.mxu0 0
    %534 = vmatpush2.bf16.msra.mxu0 0
    %535 = vmatprep.subr.bf16.mxu0 0
    %536 = vmatpush2.bf16.msra.mxu0 0
    %537 = vmatprep.mubr.bf16.mxu0 0
    %538 = vmatmul.mubr.bf16.gmra.mxu0 %v500
    %v539 = vpop.f32.mrf.mxu0
    %v540 = vadd.f32 0.0, %v539
    %v541 = vpop.f32.mrf.mxu0
    %v542 = vpop.f32.mrf.mxu0
    %v543 = vadd.f32 0.0, %v542
    %v544 = vpop.f32.mrf.mxu0
    %545 = vmatprep.mubr.bf16.mxu0 0
    %546 = vmatmul.mubr.bf16.gmra.mxu0 %v503
    %v547 = vpop.f32.mrf.mxu0
    %v548 = vadd.f32 0.0, %v547
    %v549 = vpop.f32.mrf.mxu0
    %v550 = vpop.f32.mrf.mxu0
    %v551 = vadd.f32 0.0, %v550
    %v552 = vpop.f32.mrf.mxu0
    %553 = vdwg.mxu0
    %558 = vrot.lane.b32.xlu0 %v540, 64
    %v559 = vpop.permute.xlu0 %558
    %560 = vrot.lane.b32.xlu0 %v543, 64
    %v561 = vpop.permute.xlu0 %560
    %562 = vrot.lane.b32.xlu0 %v548, 64
    %v563 = vpop.permute.xlu0 %562
    %564 = vrot.lane.b32.xlu0 %v551, 64
    %v565 = vpop.permute.xlu0 %564
    %v570 = vadd.f32 %v216, %v559
    %v571 = vadd.f32 %v217, %v561
    %v572 = vadd.f32 %v191, %v563
    %v573 = vadd.f32 %v192, %v565
    %578 = vrot.lane.b32.xlu0 %v570, 64
    %v579 = vpop.permute.xlu0 %578
    %580 = vrot.lane.b32.xlu0 %v571, 64
    %v581 = vpop.permute.xlu0 %580
    %582 = vrot.lane.b32.xlu0 %v572, 64
    %v583 = vpop.permute.xlu0 %582
    %584 = vrot.lane.b32.xlu0 %v573, 64
    %v585 = vpop.permute.xlu0 %584
    %v590 = vsel %vm201, %v579, 0.0
    %591 = vadd.xlane.f32.xlu0 %v590
    %v592 = vpop.xlane.xlu0 %591
    %v593 = vsel %vm201, %v581, 0.0
    %594 = vadd.xlane.f32.xlu0 %v593
    %v595 = vpop.xlane.xlu0 %594
    %v596 = vsel %vm201, %v583, 0.0
    %597 = vadd.xlane.f32.xlu0 %v596
    %v598 = vpop.xlane.xlu0 %597
    %v599 = vsel %vm201, %v585, 0.0
    %600 = vadd.xlane.f32.xlu0 %v599
    %v601 = vpop.xlane.xlu0 %600
    %v602 = vrcp.pop 32.0
    %v603 = vmul.f32 %v592, %v602
    %v604 = vmul.f32 %v595, %v602
    %v605 = vmul.f32 %v598, %v602
    %v606 = vmul.f32 %v601, %v602
    %v607 = vsub.f32 %v570, %v603
    %v608 = vsub.f32 %v571, %v604
    %v609 = vsub.f32 %v572, %v605
    %v610 = vsub.f32 %v573, %v606
    %v611 = vmul.f32 %v607, %v607
    %v612 = vmul.f32 %v608, %v608
    %v613 = vmul.f32 %v609, %v609
    %v614 = vmul.f32 %v610, %v610
    %619 = vrot.lane.b32.xlu0 %v611, 64
    %v620 = vpop.permute.xlu0 %619
    %621 = vrot.lane.b32.xlu0 %v612, 64
    %v622 = vpop.permute.xlu0 %621
    %623 = vrot.lane.b32.xlu0 %v613, 64
    %v624 = vpop.permute.xlu0 %623
    %625 = vrot.lane.b32.xlu0 %v614, 64
    %v626 = vpop.permute.xlu0 %625
    %v631 = vsel %vm201, %v620, 0.0
    %632 = vadd.xlane.f32.xlu0 %v631
    %v633 = vpop.xlane.xlu0 %632
    %v634 = vsel %vm201, %v622, 0.0
    %635 = vadd.xlane.f32.xlu0 %v634
    %v636 = vpop.xlane.xlu0 %635
    %v637 = vsel %vm201, %v624, 0.0
    %638 = vadd.xlane.f32.xlu0 %v637
    %v639 = vpop.xlane.xlu0 %638
    %v640 = vsel %vm201, %v626, 0.0
    %641 = vadd.xlane.f32.xlu0 %v640
    %v642 = vpop.xlane.xlu0 %641
    %v643 = vmul.f32 %v633, %v602
    %v644 = vmul.f32 %v636, %v602
    %v645 = vmul.f32 %v639, %v602
    %v646 = vmul.f32 %v642, %v602
    %v647 = vadd.f32 %v643, 1e-05
    %v648 = vadd.f32 %v644, 1e-05
    %v649 = vadd.f32 %v645, 1e-05
    %v650 = vadd.f32 %v646, 1e-05
    %v651 = vrsqrt.pop %v647
    %v652 = vrsqrt.pop %v648
    %v653 = vrsqrt.pop %v649
    %v654 = vrsqrt.pop %v650
    %v655 = vmul.f32 %v607, %v651
    %v656 = vmul.f32 %v608, %v652
    %v657 = vmul.f32 %v609, %v653
    %v658 = vmul.f32 %v610, %v654
    %v659 = vlaneseq
    %v660 = vshrl.u32 %v659, 7
    %v661 = vsub.s32 0, %v660
    %v662 = vrot.slane %v65, %v661
    %664 = vrot.lane.b32.xlu0 %v662, 64
    %v665 = vpop.permute.xlu0 %664
    %v667 = vmul.f32 %v655, %v665
    %v668 = vmul.f32 %v656, %v665
    %v669 = vmul.f32 %v657, %v665
    %v670 = vmul.f32 %v658, %v665
    %v671 = vlaneseq
    %v672 = vshrl.u32 %v671, 7
    %v673 = vsub.s32 0, %v672
    %v674 = vrot.slane %v66, %v673
    %676 = vrot.lane.b32.xlu0 %v674, 64
    %v677 = vpop.permute.xlu0 %676
    %v679 = vadd.f32 %v667, %v677
    %v680 = vadd.f32 %v668, %v677
    %v681 = vadd.f32 %v669, %v677
    %v682 = vadd.f32 %v670, %v677
    %v683 = vpack.c.bf16 %v680, %v679
    %v684 = vpack.c.bf16 %v682, %v681
    %v685 = vld [vmem:[#allocation2 + $0x10] sm:$0xf]
    %v686 = vld [vmem:[#allocation2 + $0x14] sm:$0xf]
    %v687 = vld [vmem:[#allocation2 + $0x18] sm:$0xf]
    %v688 = vld [vmem:[#allocation2 + $0x1c] sm:$0xf]
    %v689 = vlaneseq
    %v690 = vshrl.u32 %v689, 7
    %v691 = vsub.s32 0, %v690
    %v692 = vrot.slane %v63, %v691
    %695 = vrot.lane.b32.xlu0 %v683, 64
    %v696 = vpop.permute.xlu0 %695
    %697 = vrot.lane.b32.xlu0 %v684, 64
    %v698 = vpop.permute.xlu0 %697
    %v703 = vunpack.c.l.b16 %v685
    %v704 = vunpack.c.l.b16 %v686
    %v705 = vunpack.c.l.b16 %v687
    %v706 = vunpack.c.l.b16 %v688
    %v707 = vpack.c.b16 %v704, %v703
    %v708 = vpack.c.b16 %v706, %v705
    %v712 = vsel %vm201, %v696, 0
    %v715 = vsel %vm201, %v698, 0
    %717 = vmatprep.subr.bf16.mxu0 0
    %718 = vmatpush1.bf16.msra.mxu0 0
    %719 = vmatprep.subr.bf16.mxu0 0
    %720 = vmatpush1.bf16.msra.mxu0 0
    %721 = vmatprep.subr.bf16.mxu0 0
    %722 = vmatpush1.bf16.msra.mxu0 0
    %723 = vmatprep.subr.bf16.mxu0 0
    %724 = vmatpush1.bf16.msra.mxu0 0
    %725 = vmatprep.subr.bf16.mxu0 0
    %726 = vmatpush1.bf16.msra.mxu0 0
    %727 = vmatprep.subr.bf16.mxu0 0
    %728 = vmatpush1.bf16.msra.mxu0 0
    %729 = vmatprep.subr.bf16.mxu0 0
    %730 = vmatpush1.bf16.msra.mxu0 %v708
    %731 = vmatprep.subr.bf16.mxu0 0
    %732 = vmatpush1.bf16.msra.mxu0 %v707
    %733 = vmatprep.subr.bf16.mxu0 0
    %734 = vmatpush2.bf16.msra.mxu0 0
    %735 = vmatprep.subr.bf16.mxu0 0
    %736 = vmatpush2.bf16.msra.mxu0 0
    %737 = vmatprep.subr.bf16.mxu0 0
    %738 = vmatpush2.bf16.msra.mxu0 0
    %739 = vmatprep.subr.bf16.mxu0 0
    %740 = vmatpush2.bf16.msra.mxu0 0
    %741 = vmatprep.subr.bf16.mxu0 0
    %742 = vmatpush2.bf16.msra.mxu0 0
    %743 = vmatprep.subr.bf16.mxu0 0
    %744 = vmatpush2.bf16.msra.mxu0 0
    %745 = vmatprep.subr.bf16.mxu0 0
    %746 = vmatpush2.bf16.msra.mxu0 0
    %747 = vmatprep.subr.bf16.mxu0 0
    %748 = vmatpush2.bf16.msra.mxu0 0
    %749 = vmatprep.mubr.bf16.mxu0 0
    %750 = vmatmul.mubr.bf16.gmra.mxu0 %v712
    %v751 = vpop.f32.mrf.mxu0
    %v752 = vadd.f32 %v692, %v751
    %v753 = vpop.f32.mrf.mxu0
    %v754 = vpop.f32.mrf.mxu0
    %v755 = vadd.f32 %v692, %v754
    %v756 = vpop.f32.mrf.mxu0
    %757 = vmatprep.mubr.bf16.mxu0 0
    %758 = vmatmul.mubr.bf16.gmra.mxu0 %v715
    %v759 = vpop.f32.mrf.mxu0
    %v760 = vadd.f32 %v692, %v759
    %v761 = vpop.f32.mrf.mxu0
    %v762 = vpop.f32.mrf.mxu0
    %v763 = vadd.f32 %v692, %v762
    %v764 = vpop.f32.mrf.mxu0
    %765 = vdwg.mxu0
    %v766 = vmul.f32 %v752, %v752
    %v767 = vmul.f32 %v755, %v755
    %v768 = vmul.f32 %v760, %v760
    %v769 = vmul.f32 %v763, %v763
    %v770 = vmul.f32 %v752, %v766
    %v771 = vmul.f32 %v755, %v767
    %v772 = vmul.f32 %v760, %v768
    %v773 = vmul.f32 %v763, %v769
    %v774 = vmul.f32 %v770, 0.044715
    %v775 = vmul.f32 %v771, 0.044715
    %v776 = vmul.f32 %v772, 0.044715
    %v777 = vmul.f32 %v773, 0.044715
    %v778 = vadd.f32 %v752, %v774
    %v779 = vadd.f32 %v755, %v775
    %v780 = vadd.f32 %v760, %v776
    %v781 = vadd.f32 %v763, %v777
    %v782 = vmul.f32 %v778, 0.7978846
    %v783 = vmul.f32 %v779, 0.7978846
    %v784 = vmul.f32 %v780, 0.7978846
    %v785 = vmul.f32 %v781, 0.7978846
    %v786 = vtanh.pop %v782
    %v787 = vtanh.pop %v783
    %v788 = vtanh.pop %v784
    %v789 = vtanh.pop %v785
    %v790 = vadd.f32 %v786, 1.0
    %v791 = vadd.f32 %v787, 1.0
    %v792 = vadd.f32 %v788, 1.0
    %v793 = vadd.f32 %v789, 1.0
    %v794 = vmul.f32 %v790, 0.5
    %v795 = vmul.f32 %v791, 0.5
    %v796 = vmul.f32 %v792, 0.5
    %v797 = vmul.f32 %v793, 0.5
    %v798 = vmul.f32 %v752, %v794
    %v799 = vmul.f32 %v755, %v795
    %v800 = vmul.f32 %v760, %v796
    %v801 = vmul.f32 %v763, %v797
    %v802 = vpack.c.bf16 %v799, %v798
    %v803 = vpack.c.bf16 %v801, %v800
    %v804 = vld [vmem:[#allocation2 + $0x40] sm:$0xf]
    %v805 = vld [vmem:[#allocation2 + $0x44] sm:$0xf]
    %v806 = vld [vmem:[#allocation2 + $0x48] sm:$0xf]
    %v807 = vld [vmem:[#allocation2 + $0x4c] sm:$0xf]
    %v808 = vld [vmem:[#allocation2 + $0x50] sm:$0xf]
    %v809 = vld [vmem:[#allocation2 + $0x54] sm:$0xf]
    %v810 = vld [vmem:[#allocation2 + $0x58] sm:$0xf]
    %v811 = vld [vmem:[#allocation2 + $0x5c] sm:$0xf]
    %v812 = vld [vmem:[#allocation2 + $0x60] sm:$0xf]
    %v813 = vld [vmem:[#allocation2 + $0x64] sm:$0xf]
    %v814 = vld [vmem:[#allocation2 + $0x68] sm:$0xf]
    %v815 = vld [vmem:[#allocation2 + $0x6c] sm:$0xf]
    %v816 = vld [vmem:[#allocation2 + $0x70] sm:$0xf]
    %v817 = vld [vmem:[#allocation2 + $0x74] sm:$0xf]
    %v818 = vld [vmem:[#allocation2 + $0x78] sm:$0xf]
    %v819 = vld [vmem:[#allocation2 + $0x7c] sm:$0xf]
    %v820 = vlaneseq
    %v821 = vshrl.u32 %v820, 7
    %v822 = vsub.s32 0, %v821
    %v823 = vrot.slane %v64, %v822
    %v840 = vunpack.c.l.b16 %v804
    %v841 = vunpack.c.l.b16 %v805
    %v842 = vunpack.c.l.b16 %v806
    %v843 = vunpack.c.l.b16 %v807
    %v844 = vunpack.c.l.b16 %v808
    %v845 = vunpack.c.l.b16 %v809
    %v846 = vunpack.c.l.b16 %v810
    %v847 = vunpack.c.l.b16 %v811
    %v848 = vunpack.c.l.b16 %v812
    %v849 = vunpack.c.l.b16 %v813
    %v850 = vunpack.c.l.b16 %v814
    %v851 = vunpack.c.l.b16 %v815
    %v852 = vunpack.c.l.b16 %v816
    %v853 = vunpack.c.l.b16 %v817
    %v854 = vunpack.c.l.b16 %v818
    %v855 = vunpack.c.l.b16 %v819
    %v856 = vpack.c.b16 %v841, %v840
    %v857 = vpack.c.b16 %v843, %v842
    %v858 = vpack.c.b16 %v845, %v844
    %v859 = vpack.c.b16 %v847, %v846
    %v860 = vpack.c.b16 %v849, %v848
    %v861 = vpack.c.b16 %v851, %v850
    %v862 = vpack.c.b16 %v853, %v852
    %v863 = vpack.c.b16 %v855, %v854
    %872 = vmatprep.subr.bf16.mxu0 0
    %873 = vmatpush1.bf16.msra.mxu0 %v863
    %874 = vmatprep.subr.bf16.mxu0 0
    %875 = vmatpush1.bf16.msra.mxu0 %v862
    %876 = vmatprep.subr.bf16.mxu0 0
    %877 = vmatpush1.bf16.msra.mxu0 %v861
    %878 = vmatprep.subr.bf16.mxu0 0
    %879 = vmatpush1.bf16.msra.mxu0 %v860
    %880 = vmatprep.subr.bf16.mxu0 0
    %881 = vmatpush1.bf16.msra.mxu0 %v859
    %882 = vmatprep.subr.bf16.mxu0 0
    %883 = vmatpush1.bf16.msra.mxu0 %v858
    %884 = vmatprep.subr.bf16.mxu0 0
    %885 = vmatpush1.bf16.msra.mxu0 %v857
    %886 = vmatprep.subr.bf16.mxu0 0
    %887 = vmatpush1.bf16.msra.mxu0 %v856
    %888 = vmatprep.subr.bf16.mxu0 0
    %889 = vmatpush2.bf16.msra.mxu0 0
    %890 = vmatprep.subr.bf16.mxu0 0
    %891 = vmatpush2.bf16.msra.mxu0 0
    %892 = vmatprep.subr.bf16.mxu0 0
    %893 = vmatpush2.bf16.msra.mxu0 0
    %894 = vmatprep.subr.bf16.mxu0 0
    %895 = vmatpush2.bf16.msra.mxu0 0
    %896 = vmatprep.subr.bf16.mxu0 0
    %897 = vmatpush2.bf16.msra.mxu0 0
    %898 = vmatprep.subr.bf16.mxu0 0
    %899 = vmatpush2.bf16.msra.mxu0 0
    %900 = vmatprep.subr.bf16.mxu0 0
    %901 = vmatpush2.bf16.msra.mxu0 0
    %902 = vmatprep.subr.bf16.mxu0 0
    %903 = vmatpush2.bf16.msra.mxu0 0
    %904 = vmatprep.mubr.bf16.mxu0 0
    %905 = vmatmul.mubr.bf16.gmra.mxu0 %v802
    %v906 = vpop.f32.mrf.mxu0
    %v907 = vadd.f32 %v823, %v906
    %v908 = vpop.f32.mrf.mxu0
    %v909 = vpop.f32.mrf.mxu0
    %v910 = vadd.f32 %v823, %v909
    %v911 = vpop.f32.mrf.mxu0
    %912 = vmatprep.mubr.bf16.mxu0 0
    %913 = vmatmul.mubr.bf16.gmra.mxu0 %v803
    %v914 = vpop.f32.mrf.mxu0
    %v915 = vadd.f32 %v823, %v914
    %v916 = vpop.f32.mrf.mxu0
    %v917 = vpop.f32.mrf.mxu0
    %v918 = vadd.f32 %v823, %v917
    %v919 = vpop.f32.mrf.mxu0
    %920 = vdwg.mxu0
    %925 = vrot.lane.b32.xlu0 %v907, 64
    %v926 = vpop.permute.xlu0 %925
    %927 = vrot.lane.b32.xlu0 %v910, 64
    %v928 = vpop.permute.xlu0 %927
    %929 = vrot.lane.b32.xlu0 %v915, 64
    %v930 = vpop.permute.xlu0 %929
    %931 = vrot.lane.b32.xlu0 %v918, 64
    %v932 = vpop.permute.xlu0 %931
    %v937 = vadd.f32 %v679, %v926
    %v938 = vadd.f32 %v680, %v928
    %v939 = vadd.f32 %v681, %v930
    %v940 = vadd.f32 %v682, %v932
    %945 = vrot.lane.b32.xlu0 %v937, 64
    %v946 = vpop.permute.xlu0 %945
    %947 = vrot.lane.b32.xlu0 %v938, 64
    %v948 = vpop.permute.xlu0 %947
    %949 = vrot.lane.b32.xlu0 %v939, 64
    %v950 = vpop.permute.xlu0 %949
    %951 = vrot.lane.b32.xlu0 %v940, 64
    %v952 = vpop.permute.xlu0 %951
    %v957 = vsel %vm201, %v946, 0.0
    %958 = vadd.xlane.f32.xlu0 %v957
    %v959 = vpop.xlane.xlu0 %958
    %v960 = vsel %vm201, %v948, 0.0
    %961 = vadd.xlane.f32.xlu0 %v960
    %v962 = vpop.xlane.xlu0 %961
    %v963 = vsel %vm201, %v950, 0.0
    %964 = vadd.xlane.f32.xlu0 %v963
    %v965 = vpop.xlane.xlu0 %964
    %v966 = vsel %vm201, %v952, 0.0
    %967 = vadd.xlane.f32.xlu0 %v966
    %v968 = vpop.xlane.xlu0 %967
    %v969 = vmul.f32 %v959, %v602
    %v970 = vmul.f32 %v962, %v602
    %v971 = vmul.f32 %v965, %v602
    %v972 = vmul.f32 %v968, %v602
    %v973 = vsub.f32 %v937, %v969
    %v974 = vsub.f32 %v938, %v970
    %v975 = vsub.f32 %v939, %v971
    %v976 = vsub.f32 %v940, %v972
    %v977 = vmul.f32 %v973, %v973
    %v978 = vmul.f32 %v974, %v974
    %v979 = vmul.f32 %v975, %v975
    %v980 = vmul.f32 %v976, %v976
    %985 = vrot.lane.b32.xlu0 %v977, 64
    %v986 = vpop.permute.xlu0 %985
    %987 = vrot.lane.b32.xlu0 %v978, 64
    %v988 = vpop.permute.xlu0 %987
    %989 = vrot.lane.b32.xlu0 %v979, 64
    %v990 = vpop.permute.xlu0 %989
    %991 = vrot.lane.b32.xlu0 %v980, 64
    %v992 = vpop.permute.xlu0 %991
    %v997 = vsel %vm201, %v986, 0.0
    %998 = vadd.xlane.f32.xlu0 %v997
    %v999 = vpop.xlane.xlu0 %998
    %v1000 = vsel %vm201, %v988, 0.0
    %1001 = vadd.xlane.f32.xlu0 %v1000
    %v1002 = vpop.xlane.xlu0 %1001
    %v1003 = vsel %vm201, %v990, 0.0
    %1004 = vadd.xlane.f32.xlu0 %v1003
    %v1005 = vpop.xlane.xlu0 %1004
    %v1006 = vsel %vm201, %v992, 0.0
    %1007 = vadd.xlane.f32.xlu0 %v1006
    %v1008 = vpop.xlane.xlu0 %1007
    %v1009 = vmul.f32 %v999, %v602
    %v1010 = vmul.f32 %v1002, %v602
    %v1011 = vmul.f32 %v1005, %v602
    %v1012 = vmul.f32 %v1008, %v602
    %v1013 = vadd.f32 %v1009, 1e-05
    %v1014 = vadd.f32 %v1010, 1e-05
    %v1015 = vadd.f32 %v1011, 1e-05
    %v1016 = vadd.f32 %v1012, 1e-05
    %v1017 = vrsqrt.pop %v1013
    %v1018 = vrsqrt.pop %v1014
    %v1019 = vrsqrt.pop %v1015
    %v1020 = vrsqrt.pop %v1016
    %v1021 = vmul.f32 %v973, %v1017
    %v1022 = vmul.f32 %v974, %v1018
    %v1023 = vmul.f32 %v975, %v1019
    %v1024 = vmul.f32 %v976, %v1020
    %v1025 = vlaneseq
    %v1026 = vshrl.u32 %v1025, 7
    %v1027 = vsub.s32 0, %v1026
    %v1028 = vrot.slane %v67, %v1027
    %1030 = vrot.lane.b32.xlu0 %v1028, 64
    %v1031 = vpop.permute.xlu0 %1030
    %v1033 = vmul.f32 %v1021, %v1031
    %v1034 = vmul.f32 %v1022, %v1031
    %v1035 = vmul.f32 %v1023, %v1031
    %v1036 = vmul.f32 %v1024, %v1031
    %v1037 = vlaneseq
    %v1038 = vshrl.u32 %v1037, 7
    %v1039 = vsub.s32 0, %v1038
    %v1040 = vrot.slane %v68, %v1039
    %1042 = vrot.lane.b32.xlu0 %v1040, 64
    %v1043 = vpop.permute.xlu0 %1042
    %v1045 = vadd.f32 %v1033, %v1043
    %v1046 = vadd.f32 %v1034, %v1043
    %v1047 = vadd.f32 %v1035, %v1043
    %v1048 = vadd.f32 %v1036, %v1043
    %v1049 = vpack.c.bf16 %v1046, %v1045
    %v1050 = vpack.c.bf16 %v1048, %v1047
    %v1051 = vld [vmem:[#allocation2 + $0x20] sm:$0xf]
    %v1052 = vld [vmem:[#allocation2 + $0x24] sm:$0xf]
    %v1053 = vld [vmem:[#allocation2 + $0x28] sm:$0xf]
    %v1054 = vld [vmem:[#allocation2 + $0x2c] sm:$0xf]
    %v1055 = vlaneseq
    %v1056 = vshrl.u32 %v1055, 7
    %v1057 = vsub.s32 0, %v1056
    %v1058 = vrot.slane %v69, %v1057
    %1061 = vrot.lane.b32.xlu0 %v1049, 64
    %v1062 = vpop.permute.xlu0 %1061
    %1063 = vrot.lane.b32.xlu0 %v1050, 64
    %v1064 = vpop.permute.xlu0 %1063
    %v1069 = vunpack.c.l.b16 %v1051
    %v1070 = vunpack.c.l.b16 %v1052
    %v1071 = vunpack.c.l.b16 %v1053
    %v1072 = vunpack.c.l.b16 %v1054
    %v1073 = vpack.c.b16 %v1070, %v1069
    %v1074 = vpack.c.b16 %v1072, %v1071
    %v1078 = vsel %vm201, %v1062, 0
    %v1081 = vsel %vm201, %v1064, 0
    %1083 = vmatprep.subr.bf16.mxu0 0
    %1084 = vmatpush1.bf16.msra.mxu0 0
    %1085 = vmatprep.subr.bf16.mxu0 0
    %1086 = vmatpush1.bf16.msra.mxu0 0
    %1087 = vmatprep.subr.bf16.mxu0 0
    %1088 = vmatpush1.bf16.msra.mxu0 0
    %1089 = vmatprep.subr.bf16.mxu0 0
    %1090 = vmatpush1.bf16.msra.mxu0 0
    %1091 = vmatprep.subr.bf16.mxu0 0
    %1092 = vmatpush1.bf16.msra.mxu0 0
    %1093 = vmatprep.subr.bf16.mxu0 0
    %1094 = vmatpush1.bf16.msra.mxu0 0
    %1095 = vmatprep.subr.bf16.mxu0 0
    %1096 = vmatpush1.bf16.msra.mxu0 %v1074
    %1097 = vmatprep.subr.bf16.mxu0 0
    %1098 = vmatpush1.bf16.msra.mxu0 %v1073
    %1099 = vmatprep.subr.bf16.mxu0 0
    %1100 = vmatpush2.bf16.msra.mxu0 0
    %1101 = vmatprep.subr.bf16.mxu0 0
    %1102 = vmatpush2.bf16.msra.mxu0 0
    %1103 = vmatprep.subr.bf16.mxu0 0
    %1104 = vmatpush2.bf16.msra.mxu0 0
    %1105 = vmatprep.subr.bf16.mxu0 0
    %1106 = vmatpush2.bf16.msra.mxu0 0
    %1107 = vmatprep.subr.bf16.mxu0 0
    %1108 = vmatpush2.bf16.msra.mxu0 0
    %1109 = vmatprep.subr.bf16.mxu0 0
    %1110 = vmatpush2.bf16.msra.mxu0 0
    %1111 = vmatprep.subr.bf16.mxu0 0
    %1112 = vmatpush2.bf16.msra.mxu0 0
    %1113 = vmatprep.subr.bf16.mxu0 0
    %1114 = vmatpush2.bf16.msra.mxu0 0
    %1115 = vmatprep.mubr.bf16.mxu0 0
    %1116 = vmatmul.mubr.bf16.gmra.mxu0 %v1078
    %v1117 = vpop.f32.mrf.mxu0
    %v1118 = vadd.f32 %v1058, %v1117
    %v1119 = vpop.f32.mrf.mxu0
    %v1120 = vpop.f32.mrf.mxu0
    %v1121 = vadd.f32 %v1058, %v1120
    %v1122 = vpop.f32.mrf.mxu0
    %1123 = vmatprep.mubr.bf16.mxu0 0
    %1124 = vmatmul.mubr.bf16.gmra.mxu0 %v1081
    %v1125 = vpop.f32.mrf.mxu0
    %v1126 = vadd.f32 %v1058, %v1125
    %v1127 = vpop.f32.mrf.mxu0
    %v1128 = vpop.f32.mrf.mxu0
    %v1129 = vadd.f32 %v1058, %v1128
    %v1130 = vpop.f32.mrf.mxu0
    %1131 = vdwg.mxu0
    %1132 = vst [vmem:[%s3] sm:$0xff] %v1118
    %1133 = vst [vmem:[%s3 + $0x8] sm:$0xff] %v1121
    %1134 = vst [vmem:[%s3 + $0x10] sm:$0xff] %v1126
    %1135 = vst [vmem:[%s3 + $0x18] sm:$0xff] %v1129
    // Predicated region
    $region22: #{prompt_shared_mlm_forward.1} parent=1 // pred_check
      _
    $region23: #{prompt_shared_mlm_forward.1} parent=1 // pred_check_branch
      %1137 = sbr.rel (0) target = $region25
    $region24: #{prompt_shared_mlm_forward.1} parent=1 // pred_region
      _
    $region25: #{prompt_shared_mlm_forward.1} parent=1 // pred_fallthru
      _
    // Predicated region
    $region26: #{prompt_shared_mlm_forward.1} parent=1 // pred_check
      _
    $region27: #{prompt_shared_mlm_forward.1} parent=1 // pred_check_branch
      %1139 = sbr.rel (0) target = $region29
    $region28: #{prompt_shared_mlm_forward.1} parent=1 // pred_region
      _
    $region29: #{prompt_shared_mlm_forward.1} parent=1 // pred_fallthru
      _
    // Predicated region
    $region30: #{prompt_shared_mlm_forward.1} parent=1 // pred_check
      _
    $region31: #{prompt_shared_mlm_forward.1} parent=1 // pred_check_branch
      %1141 = sbr.rel (0) target = $region33
    $region32: #{prompt_shared_mlm_forward.1} parent=1 // pred_region
      _
    $region33: #{prompt_shared_mlm_forward.1} parent=1 // pred_fallthru
      _
    // Predicated region
    $region34: #{prompt_shared_mlm_forward.1} parent=1 // pred_check
      _
    $region35: #{prompt_shared_mlm_forward.1} parent=1 // pred_check_branch
      %1143 = sbr.rel (0) target = $region37
    $region36: #{prompt_shared_mlm_forward.1} parent=1 // pred_region
      _
    $region37: #{prompt_shared_mlm_forward.1} parent=1 // pred_fallthru
      _
    %1144 = vsyncpa [#allocation3], 1
    %1145 = vsyncpa [#allocation5], 1

</llo_original>
